<compile_context>
chip_gen: v7x
topology: tpu7x:2x2x1
jax: 0.10.0
libtpu: 0.0.40
codegen_flags: <defaults>
</compile_context>

<pallas_src>
import jax
import jax.numpy as jnp
from jax.experimental import pallas as pl
from jax.experimental.pallas import tpu as pltpu


def _round_up(x, m):
    return (x + m - 1) // m * m


def _linear_kernel(x_ref, w_ref, b_ref, o_ref, acc_ref):
    k = pl.program_id(2)

    @pl.when(k == 0)
    def _():
        acc_ref[...] = jnp.zeros_like(acc_ref)

    # bf16 x bf16 -> f32 accumulate on the MXU.
    acc_ref[...] += jnp.dot(
        x_ref[...], w_ref[...], preferred_element_type=jnp.float32
    )

    @pl.when(k == pl.num_programs(2) - 1)
    def _():
        # f32 epilogue: the MXU accumulator is already f32, bias stays f32
        # (avoids bf16 VPU ops that v5e would have to emulate).
        o_ref[...] = (acc_ref[...] + b_ref[...]).astype(o_ref.dtype)


def origin_network_forward(x_nchw, weight, bias, *, tm=128, tn=128, tk=512):
    """forward(x) = model(x), model = flatten + Linear(K, num_classes)."""
    n = x_nchw.shape[0]
    k = x_nchw.shape[1] * x_nchw.shape[2] * x_nchw.shape[3]
    num_classes = weight.shape[1]

    # torch.flatten(x, 1) equivalent; cast activations/weights to bf16.
    x2d = x_nchw.reshape(n, k).astype(jnp.bfloat16)
    w = weight.astype(jnp.bfloat16)
    b = bias.astype(jnp.float32).reshape(1, num_classes)

    # Pad to MXU-friendly, lane-dense tile multiples; zero K-padding is exact.
    m_pad = _round_up(max(n, 1), tm)
    k_pad = _round_up(k, tk)
    n_pad = _round_up(num_classes, tn)

    x_p = jnp.zeros((m_pad, k_pad), jnp.bfloat16).at[:n, :k].set(x2d)
    w_p = jnp.zeros((k_pad, n_pad), jnp.bfloat16).at[:k, :num_classes].set(w)
    b_p = jnp.zeros((1, n_pad), jnp.float32).at[:, :num_classes].set(b)

    grid = (m_pad // tm, n_pad // tn, k_pad // tk)

    cost = pl.CostEstimate(
        flops=2 * m_pad * k_pad * n_pad,
        transcendentals=0,
        bytes_accessed=(
            m_pad * k_pad * 2      # x (bf16)
            + k_pad * n_pad * 2    # weight (bf16)
            + m_pad * n_pad * 4    # output (f32)
            + n_pad * 4            # bias (f32)
        ),
    )

    out_p = pl.pallas_call(
        _linear_kernel,
        out_shape=jax.ShapeDtypeStruct((m_pad, n_pad), jnp.float32),
        grid=grid,
        in_specs=[
            pl.BlockSpec((tm, tk), lambda i, j, kk: (i, kk)),
            pl.BlockSpec((tk, tn), lambda i, j, kk: (kk, j)),
            pl.BlockSpec((1, tn), lambda i, j, kk: (0, j)),
        ],
        out_specs=pl.BlockSpec((tm, tn), lambda i, j, kk: (i, j)),
        scratch_shapes=[pltpu.VMEM((tm, tn), jnp.float32)],
        compiler_params=pltpu.CompilerParams(
            dimension_semantics=("parallel", "parallel", "arbitrary"),
        ),
        cost_estimate=cost,
    )(x_p, w_p, b_p)

    # Slice off the padded rows / lanes.
    return out_p[:n, :num_classes]


if __name__ == "__main__":
    # Small shapes consistent with an NCHW image classifier input.
    batch, channels, height, width = 2, 4, 16, 16
    num_classes = 10
    k_dim = channels * height * width

    key = jax.random.PRNGKey(0)
    kx, kw, kb = jax.random.split(key, 3)

    x = jax.random.normal(kx, (batch, channels, height, width), dtype=jnp.float32)
    # Deterministic parameter init (synthetic; not a checkpoint load).
    weight = jax.random.normal(kw, (k_dim, num_classes), dtype=jnp.float32) * 0.02
    bias = jax.random.normal(kb, (num_classes,), dtype=jnp.float32) * 0.02

    out = origin_network_forward(x, weight, bias)
    out = jax.block_until_ready(out)

    # Reference with the same bf16-input / f32-accumulate contract.
    x2d = x.reshape(batch, k_dim).astype(jnp.bfloat16)
    w_bf = weight.astype(jnp.bfloat16)
    ref = jnp.dot(x2d, w_bf, preferred_element_type=jnp.float32) + bias
    # Sanity check against the pure-f32 forward as well (looser tolerance).
    ref_f32 = x.reshape(batch, k_dim) @ weight + bias

    assert out.shape == (batch, num_classes)
    assert jnp.allclose(out, ref, atol=1e-3, rtol=1e-3)
    assert jnp.allclose(out, ref_f32, atol=5e-2, rtol=5e-2)

    print("KERNEL_OK")
</pallas_src>

<mosaic_0001>
module attributes {stable_mosaic.version = 11 : i64} {
  func.func @_linear_kernel(%arg0: i32, %arg1: i32, %arg2: i32, %arg3: memref<128x512xbf16, #tpu.memory_space<vmem>>, %arg4: memref<512x128xbf16, #tpu.memory_space<vmem>>, %arg5: memref<1x128xf32, #tpu.memory_space<vmem>>, %arg6: memref<128x128xf32, #tpu.memory_space<vmem>>, %arg7: memref<128x128xf32, #tpu.memory_space<vmem>>) attributes {dimension_semantics = [#tpu.dimension_semantics<parallel>, #tpu.dimension_semantics<parallel>, #tpu.dimension_semantics<arbitrary>], iteration_bounds = array<i64: 1, 1, 2>, scalar_prefetch = 0 : i64, scratch_operands = 1 : i64, tpu.core_type = #tpu.core_type<tc>, window_params = [{transform_indices = @transform_0, window_bounds = array<i64: 128, 512>}, {transform_indices = @transform_1, window_bounds = array<i64: 512, 128>}, {transform_indices = @transform_2, window_bounds = array<i64: 1, 128>}, {transform_indices = @transform_3, window_bounds = array<i64: 128, 128>}]} {
    %c0_i32 = arith.constant 0 : i32
    %0 = arith.cmpi eq, %arg2, %c0_i32 : i32
    %1 = arith.extui %0 : i1 to i32
    %c0_i32_0 = arith.constant 0 : i32
    %2 = arith.cmpi ne, %1, %c0_i32_0 : i32
    scf.if %2 {
      %cst_9 = arith.constant 0.000000e+00 : f32
      %12 = vector.broadcast %cst_9 : f32 to vector<128x128xf32>
      %c0_10 = arith.constant 0 : index
      %c0_11 = arith.constant 0 : index
      %13 = vector.load %arg7[%c0_10, %c0_11] : memref<128x128xf32, #tpu.memory_space<vmem>>, vector<128x128xf32>
      tpu.vector_store %arg7[%c0_10, %c0_11], %12 {strides = array<i32>} : memref<128x128xf32, #tpu.memory_space<vmem>>, vector<128x128xf32>,
    } else {
    }
    %c0 = arith.constant 0 : index
    %c0_1 = arith.constant 0 : index
    %3 = vector.load %arg7[%c0, %c0_1] : memref<128x128xf32, #tpu.memory_space<vmem>>, vector<128x128xf32>
    %c0_2 = arith.constant 0 : index
    %c0_3 = arith.constant 0 : index
    %4 = vector.load %arg3[%c0_2, %c0_3] : memref<128x512xbf16, #tpu.memory_space<vmem>>, vector<128x512xbf16>
    %c0_4 = arith.constant 0 : index
    %c0_5 = arith.constant 0 : index
    %5 = vector.load %arg4[%c0_4, %c0_5] : memref<512x128xbf16, #tpu.memory_space<vmem>>, vector<512x128xbf16>
    %cst = arith.constant dense<0.000000e+00> : vector<128x128xf32>
    %6 = tpu.matmul %4, %5, %cst {dimension_numbers = #tpu.dot_dimension_numbers<[1], [0], [0], [1], [0, 0, 1, 1], [], []>} : vector<128x512xbf16>, vector<512x128xbf16>, vector<128x128xf32> -> vector<128x128xf32>
    %7 = arith.addf %3, %6 : vector<128x128xf32>
    %c0_6 = arith.constant 0 : index
    %c0_7 = arith.constant 0 : index
    %8 = vector.load %arg7[%c0_6, %c0_7] : memref<128x128xf32, #tpu.memory_space<vmem>>, vector<128x128xf32>
    tpu.vector_store %arg7[%c0_6, %c0_7], %7 {strides = array<i32>} : memref<128x128xf32, #tpu.memory_space<vmem>>, vector<128x128xf32>,
    %c1_i32 = arith.constant 1 : i32
    %9 = arith.cmpi eq, %arg2, %c1_i32 : i32
    %10 = arith.extui %9 : i1 to i32
    %c0_i32_8 = arith.constant 0 : i32
    %11 = arith.cmpi ne, %10, %c0_i32_8 : i32
    scf.if %11 {
      %c0_9 = arith.constant 0 : index
      %c0_10 = arith.constant 0 : index
      %12 = vector.load %arg7[%c0_9, %c0_10] : memref<128x128xf32, #tpu.memory_space<vmem>>, vector<128x128xf32>
      %c0_11 = arith.constant 0 : index
      %c0_12 = arith.constant 0 : index
      %13 = vector.load %arg5[%c0_11, %c0_12] : memref<1x128xf32, #tpu.memory_space<vmem>>, vector<1x128xf32>
      %14 = vector.broadcast %13 : vector<1x128xf32> to vector<128x128xf32>
      %15 = arith.addf %12, %14 : vector<128x128xf32>
      %c0_13 = arith.constant 0 : index
      %c0_14 = arith.constant 0 : index
      %16 = vector.load %arg6[%c0_13, %c0_14] : memref<128x128xf32, #tpu.memory_space<vmem>>, vector<128x128xf32>
      tpu.vector_store %arg6[%c0_13, %c0_14], %15 {strides = array<i32>} : memref<128x128xf32, #tpu.memory_space<vmem>>, vector<128x128xf32>,
    } else {
    }
    return
  }
  func.func @transform_0(%arg0: i32, %arg1: i32, %arg2: i32) -> (i32, i32) {
    %c0_i32 = arith.constant 0 : i32
    return %arg0, %arg2 : i32, i32
  }
  func.func @transform_1(%arg0: i32, %arg1: i32, %arg2: i32) -> (i32, i32) {
    %c0_i32 = arith.constant 0 : i32
    return %arg2, %arg1 : i32, i32
  }
  func.func @transform_2(%arg0: i32, %arg1: i32, %arg2: i32) -> (i32, i32) {
    %c0_i32 = arith.constant 0 : i32
    %c0_i32_0 = arith.constant 0 : i32
    return %c0_i32, %arg1 : i32, i32
  }
  func.func @transform_3(%arg0: i32, %arg1: i32, %arg2: i32) -> (i32, i32) {
    %c0_i32 = arith.constant 0 : i32
    return %arg0, %arg1 : i32, i32
  }
}

</mosaic_0001>

<llo_original>
// kernel: tpu_custom_call.1
$region0: #{tpu_custom_call.1}
  #allocation0 [shape = 'u32[]', space=smem, size = 0x4, offset = 0x4, fixed_abs, tag = 'smem constant byte address 0x4 - core index']
  #allocation1 [shape = 'u32[144,128]{1,0:T(1,128)}', space=vmem, size = 0x12000, scoped, tag = 'internal scratch']
  #allocation2 [shape = 'f32[128,128]{1,0:T(8,128)}', space=vmem, size = 0x10000, scoped, tag = 'scratch operand']
  %s0 = inlined_call_operand.hbm [shape: bf16[128,1024], index: 0, kind: input, shape index: {}]
  %s1 = inlined_call_operand.hbm [shape: bf16[1024,128], index: 1, kind: input, shape index: {}]
  %s2 = inlined_call_operand.vmem [shape: f32[1,128], index: 2, kind: input, shape index: {}]
  %s3 = inlined_call_operand.hbm [shape: f32[128,128], index: 3, kind: output, shape index: {}]
  %s4 = sld [smem:[#allocation0]]
  $region61: #{tpu_custom_call.1} parent=0
    _
  %s6 = ssub.s32 1, %s4
  %s7 = scalar_select 0, %s6, %s4
  $region1: #{tpu_custom_call.1} parent=0
    #allocation3 [shape = 'u8[262144]{0}', space=vmem, size = 0x40000, scoped, tag = 'input window, operand 0']
    #allocation4 [shape = 's32[2]{0}', space=sflag, size = 0x8, scoped, tag = 'scoped memory for tpu_custom_call.1']
    #allocation5 [shape = 's32[2]{0}', space=sflag, size = 0x8, scoped, tag = 'scoped memory for tpu_custom_call.1']
    #allocation6 [shape = 'u8[262144]{0}', space=vmem, size = 0x40000, scoped, tag = 'input window, operand 1']
    #allocation7 [shape = 's32[2]{0}', space=sflag, size = 0x8, scoped, tag = 'scoped memory for tpu_custom_call.1']
    #allocation8 [shape = 'u8[65536]{0}', space=vmem, size = 0x10000, scoped, tag = 'output window, operand 0, single buffered']
    %8 = vsyncpa [#allocation4], 0
    %s9 = scalar_lea.sflag [#allocation4], 1
    %10 = vsyncpa %s9, 0
    %11 = vsyncpa [#allocation7], 0
    %s12 = scalar_lea.sflag [#allocation7], 1
    %13 = vsyncpa %s12, 0
    %14 = vsyncpa [#allocation5], 0
    loop: start=0, step=1, limit=4
    $region2: #{tpu_custom_call.1} parent=1 // loop_pre_header
      _
    $region3: #{tpu_custom_call.1} parent=1 // loop_header
      %s16 = sphi 0, %s20
      %p17 = scmp.ge.s32.totalorder %s16, 4
      %s23 = sphi 0, %s42
      %s24 = sphi 0, %s38
      %s25 = sphi 0, %s34
      %s26 = sphi 0, %s23
      %s27 = sphi 0, %s24
      %s28 = sphi 0, %s25
      %s29 = sphi 0, %s26
      %s30 = sphi 0, %s27
      %s31 = sphi 0, %s28
      %s47 = sphi 0, %s49
      %s50 = sphi 0, %s47
      %s51 = sphi 0, %s50
      %s67 = sphi 0, %s51
      %s75 = sphi 0, %s77
      %s78 = sphi 0, %s75
      %s79 = sphi 0, %s78
      %s95 = sphi 0, %s79
      %s101 = sphi 0, %s103
      %s104 = sphi 0, %s101
      %s105 = sphi 0, %s104
      %s121 = sphi 0, %s105
      %s129 = sphi 0, %s131
      %s132 = sphi 0, %s129
      %s133 = sphi 0, %s132
      %s149 = sphi 0, %s133
    $region4: #{tpu_custom_call.1} parent=1 // loop_header_branch
      %19 = sbr.rel (%p17) target = $region8
    $region5: #{tpu_custom_call.1} parent=1 // loop_body
      %s21 = ssub.s32 %s16, 1
      %s22 = ssub.s32 %s16, 2
      %s32 = sadd.s32 1, %s25
      %p33 = scmp.ge.s32.totalorder %s32, 2
      %s34 = scalar_select %p33, 0, %s32
      %s35 = sadd.s32 1, %s24
      %s36 = scalar_select %p33, %s35, %s24
      %p37 = scmp.ge.s32.totalorder %s36, 1
      %s38 = scalar_select %p37, 0, %s36
      %s39 = sadd.s32 1, %s23
      %s40 = scalar_select %p37, %s39, %s23
      %p41 = scmp.ge.s32.totalorder %s40, 1
      %s42 = scalar_select %p41, 0, %s40
      %s43 = ssub.s32 %s23, %s42
      %s44 = ssub.s32 %s25, %s34
      %s45 = sor.u32 %s43, %s44
      %p46 = scmp.eq.s32.totalorder %s45, 0
      %s48 = sadd.s32 %s47, 1
      %s49 = scalar_select %p46, %s47, %s48
      %p52 = pneg %p46
      %p53 = scmp.eq.s32.totalorder %s16, 1
      %p54 = por %p52, %p53
      %p55 = scmp.ne.s32.totalorder %s47, %s50
      %p56 = scmp.eq.s32.totalorder %s16, 0
      %p57 = por %p55, %p56
      %p58 = scmp.ne.s32.totalorder %s47, %s50
      %p59 = scmp.eq.s32.totalorder %s21, 1
      %p60 = por %p58, %p59
      %p61 = scmp.ne.s32.totalorder %s50, %s51
      %p62 = scmp.eq.s32.totalorder %s21, 0
      %p63 = por %p61, %p62
      %p64 = scmp.ne.s32.totalorder %s50, %s51
      %p65 = scmp.eq.s32.totalorder %s22, 1
      %p66 = por %p64, %p65
      %p68 = scmp.ne.s32.totalorder %s51, %s67
      %p69 = scmp.eq.s32.totalorder %s22, 0
      %p70 = por %p68, %p69
      %s71 = ssub.s32 %s25, %s34
      %s72 = ssub.s32 %s24, %s38
      %s73 = sor.u32 %s71, %s72
      %p74 = scmp.eq.s32.totalorder %s73, 0
      %s76 = sadd.s32 %s75, 1
      %s77 = scalar_select %p74, %s75, %s76
      %p80 = pneg %p74
      %p81 = scmp.eq.s32.totalorder %s16, 1
      %p82 = por %p80, %p81
      %p83 = scmp.ne.s32.totalorder %s75, %s78
      %p84 = scmp.eq.s32.totalorder %s16, 0
      %p85 = por %p83, %p84
      %p86 = scmp.ne.s32.totalorder %s75, %s78
      %p87 = scmp.eq.s32.totalorder %s21, 1
      %p88 = por %p86, %p87
      %p89 = scmp.ne.s32.totalorder %s78, %s79
      %p90 = scmp.eq.s32.totalorder %s21, 0
      %p91 = por %p89, %p90
      %p92 = scmp.ne.s32.totalorder %s78, %s79
      %p93 = scmp.eq.s32.totalorder %s22, 1
      %p94 = por %p92, %p93
      %p96 = scmp.ne.s32.totalorder %s79, %s95
      %p97 = scmp.eq.s32.totalorder %s22, 0
      %p98 = por %p96, %p97
      %s99 = ssub.s32 %s24, %s38
      %p100 = scmp.eq.s32.totalorder %s99, 0
      %s102 = sadd.s32 %s101, 1
      %s103 = scalar_select %p100, %s101, %s102
      %p106 = pneg %p100
      %p107 = scmp.eq.s32.totalorder %s16, 1
      %p108 = por %p106, %p107
      %p109 = scmp.ne.s32.totalorder %s101, %s104
      %p110 = scmp.eq.s32.totalorder %s16, 0
      %p111 = por %p109, %p110
      %p112 = scmp.ne.s32.totalorder %s101, %s104
      %p113 = scmp.eq.s32.totalorder %s21, 1
      %p114 = por %p112, %p113
      %p115 = scmp.ne.s32.totalorder %s104, %s105
      %p116 = scmp.eq.s32.totalorder %s21, 0
      %p117 = por %p115, %p116
      %p118 = scmp.ne.s32.totalorder %s104, %s105
      %p119 = scmp.eq.s32.totalorder %s22, 1
      %p120 = por %p118, %p119
      %p122 = scmp.ne.s32.totalorder %s105, %s121
      %p123 = scmp.eq.s32.totalorder %s22, 0
      %p124 = por %p122, %p123
      %s125 = ssub.s32 %s23, %s42
      %s126 = ssub.s32 %s24, %s38
      %s127 = sor.u32 %s125, %s126
      %p128 = scmp.eq.s32.totalorder %s127, 0
      %s130 = sadd.s32 %s129, 1
      %s131 = scalar_select %p128, %s129, %s130
      %p134 = pneg %p128
      %p135 = scmp.eq.s32.totalorder %s16, 1
      %p136 = por %p134, %p135
      %p137 = scmp.ne.s32.totalorder %s129, %s132
      %p138 = scmp.eq.s32.totalorder %s16, 0
      %p139 = por %p137, %p138
      %p140 = scmp.ne.s32.totalorder %s129, %s132
      %p141 = scmp.eq.s32.totalorder %s21, 1
      %p142 = por %p140, %p141
      %p143 = scmp.ne.s32.totalorder %s132, %s133
      %p144 = scmp.eq.s32.totalorder %s21, 0
      %p145 = por %p143, %p144
      %p146 = scmp.ne.s32.totalorder %s132, %s133
      %p147 = scmp.eq.s32.totalorder %s22, 1
      %p148 = por %p146, %p147
      %p150 = scmp.ne.s32.totalorder %s133, %s149
      %p151 = scmp.eq.s32.totalorder %s22, 0
      %p152 = por %p150, %p151
      %p153 = scmp.le.s32.totalorder 1, %s16
      %p154 = scmp.lt.s32.totalorder %s16, 3
      %p155 = pnand %p153, %p154
      %p156 = pneg %p155
      // Predicated region
      $region9: #{tpu_custom_call.1} parent=5 // pred_check
        _
      $region10: #{tpu_custom_call.1} parent=5 // pred_check_branch
        %158 = sbr.rel (%p155) target = $region12
      $region11: #{tpu_custom_call.1} parent=5 // pred_region
        %s159 = ssub.s32 %s16, 1
        // Predicated region
        $region13: #{tpu_custom_call.1} parent=11 // pred_check
          %p160 = pneg %p117
        $region14: #{tpu_custom_call.1} parent=11 // pred_check_branch
          %162 = sbr.rel (%p160) target = $region16
        $region15: #{tpu_custom_call.1} parent=11 // pred_region
          %p163 = scmp.lt.s32.totalorder %s27, 0
          %s164 = scalar_select %p163, %s27, 0
          %s165 = scalar_lea.vmem %s2, %s164
        $region16: #{tpu_custom_call.1} parent=11 // pred_fallthru
          _
      $region12: #{tpu_custom_call.1} parent=5 // pred_fallthru
        _
      %p166 = scmp.lt.s32.totalorder %s16, 2
      // Predicated region
      $region17: #{tpu_custom_call.1} parent=5 // pred_check
        %p167 = pneg %p166
      $region18: #{tpu_custom_call.1} parent=5 // pred_check_branch
        %169 = sbr.rel (%p167) target = $region20
      $region19: #{tpu_custom_call.1} parent=5 // pred_region
        // Predicated region
        $region21: #{tpu_custom_call.1} parent=19 // pred_check
          %p170 = pneg %p57
        $region22: #{tpu_custom_call.1} parent=19 // pred_check_branch
          %172 = sbr.rel (%p170) target = $region24
        $region23: #{tpu_custom_call.1} parent=19 // pred_region
          %s173 = sand.u32 %s47, 1
          %s174 = scalar_lea.sflag [#allocation4], %s173
          %s175 = sand.u32 %s47, 1
          %s176 = smul.addr %s175, 256
          %s177 = scalar_lea.vmem [#allocation3], %s176
          %s178 = smul.u32 16, %s23
          %s179 = smul.u32 4, %s25
          %s181 = ssub.s32 4096, 4096
          %182 = vsyncadd %s174, %s181
          %s183 = smul.addr %s178, 8
          %s184 = sadd.s32 %s179, %s183
          %s185 = smul.addr %s184, 64
          %s186 = scalar_lea.hbm %s0, %s185
          %s187 = sshll.u32 %s177, 4
          %s188 = int_to_ptr.vmem [resolvable:$true] %s187
          %193 = dma.hbm_to_vmem [thread:$0]  %s186, 4096, %s188, %s174, 512, 256, 16
        $region24: #{tpu_custom_call.1} parent=19 // pred_fallthru
          _
        // Predicated region
        $region25: #{tpu_custom_call.1} parent=19 // pred_check
          %p194 = pneg %p85
        $region26: #{tpu_custom_call.1} parent=19 // pred_check_branch
          %196 = sbr.rel (%p194) target = $region28
        $region27: #{tpu_custom_call.1} parent=19 // pred_region
          %s197 = sand.u32 %s75, 1
          %s198 = scalar_lea.sflag [#allocation7], %s197
          %s199 = sand.u32 %s75, 1
          %s200 = smul.addr %s199, 256
          %s201 = scalar_lea.vmem [#allocation6], %s200
          %s202 = smul.u32 64, %s25
          %s204 = ssub.s32 4096, 4096
          %205 = vsyncadd %s198, %s204
          %s206 = sadd.s32 %s24, %s202
          %s207 = smul.addr %s206, 64
          %s208 = scalar_lea.hbm %s1, %s207
          %s209 = sshll.u32 %s201, 4
          %s210 = int_to_ptr.vmem [resolvable:$true] %s209
          %215 = dma.hbm_to_vmem [thread:$0]  %s208, 4096, %s210, %s198, 64, 64, 4
        $region28: #{tpu_custom_call.1} parent=19 // pred_fallthru
          _
      $region20: #{tpu_custom_call.1} parent=5 // pred_fallthru
        _
      %p216 = scmp.le.s32.totalorder 1, %s16
      %p217 = scmp.lt.s32.totalorder %s16, 3
      %p218 = pnand %p216, %p217
      %p219 = pneg %p218
      // Predicated region
      $region29: #{tpu_custom_call.1} parent=5 // pred_check
        _
      $region30: #{tpu_custom_call.1} parent=5 // pred_check_branch
        %221 = sbr.rel (%p218) target = $region32
      $region31: #{tpu_custom_call.1} parent=5 // pred_region
        %s222 = ssub.s32 %s16, 1
        %s223 = sand.u32 %s50, 1
        %s224 = scalar_lea.sflag [#allocation4], %s223
        %s225 = sand.u32 %s50, 1
        %s226 = smul.addr %s225, 256
        %s227 = scalar_lea.vmem [#allocation3], %s226
        // Predicated region
        $region33: #{tpu_custom_call.1} parent=31 // pred_check
          %p228 = pneg %p63
        $region34: #{tpu_custom_call.1} parent=31 // pred_check_branch
          %230 = sbr.rel (%p228) target = $region36
        $region35: #{tpu_custom_call.1} parent=31 // pred_region
          %231 = dma.done %s224, 4096
        $region36: #{tpu_custom_call.1} parent=31 // pred_fallthru
          _
        %s232 = sand.u32 %s78, 1
        %s233 = scalar_lea.sflag [#allocation7], %s232
        %s234 = sand.u32 %s78, 1
        %s235 = smul.addr %s234, 256
        %s236 = scalar_lea.vmem [#allocation6], %s235
        // Predicated region
        $region37: #{tpu_custom_call.1} parent=31 // pred_check
          %p237 = pneg %p91
        $region38: #{tpu_custom_call.1} parent=31 // pred_check_branch
          %239 = sbr.rel (%p237) target = $region40
        $region39: #{tpu_custom_call.1} parent=31 // pred_region
          %240 = dma.done %s233, 4096
        $region40: #{tpu_custom_call.1} parent=31 // pred_fallthru
          _
        %s241 = sand.u32 %s50, 1
        %s242 = scalar_lea.sflag [#allocation4], %s241
        %s243 = sand.u32 %s50, 1
        %s244 = smul.addr %s243, 256
        %s245 = scalar_lea.vmem [#allocation3], %s244
        %p246 = pneg %p63
        %p247 = pneg %p60
        %s248 = sand.u32 %s78, 1
        %s249 = scalar_lea.sflag [#allocation7], %s248
        %s250 = sand.u32 %s78, 1
        %s251 = smul.addr %s250, 256
        %s252 = scalar_lea.vmem [#allocation6], %s251
        %p253 = pneg %p91
        %p254 = pneg %p88
        %p255 = scmp.lt.s32.totalorder %s27, 0
        %s256 = scalar_select %p255, %s27, 0
        %s257 = scalar_lea.vmem %s2, %s256
        %p258 = pneg %p117
        %p259 = pneg %p114
        %p260 = pneg %p145
        %p261 = pneg %p142
        %s262 = smul.u32 16, %s26
        %s263 = smul.u32 4, %s28
        %s264 = smul.u32 64, %s28
        %p265 = scmp.lt.s32.totalorder %s27, 0
        %s266 = scalar_select %p265, %s27, 0
        %s267 = scalar_lea.vmem %s2, %s266
        %s268 = smul.u32 16, %s26
        %p270 = scmp.eq.s32.totalorder %s28, 0
        // Predicated region
        $region41: #{tpu_custom_call.1} parent=31 // pred_check
          %p271 = pneg %p270
        $region42: #{tpu_custom_call.1} parent=31 // pred_check_branch
          %273 = sbr.rel (%p271) target = $region44
        $region43: #{tpu_custom_call.1} parent=31 // pred_region
          %274 = vst [vmem:[#allocation2] sm:$0xff] 0.0
          %275 = vst [vmem:[#allocation2 + $0x8] sm:$0xff] 0.0
          %276 = vst [vmem:[#allocation2 + $0x10] sm:$0xff] 0.0
          %277 = vst [vmem:[#allocation2 + $0x18] sm:$0xff] 0.0
          %278 = vst [vmem:[#allocation2 + $0x20] sm:$0xff] 0.0
          %279 = vst [vmem:[#allocation2 + $0x28] sm:$0xff] 0.0
          %280 = vst [vmem:[#allocation2 + $0x30] sm:$0xff] 0.0
          %281 = vst [vmem:[#allocation2 + $0x38] sm:$0xff] 0.0
          %282 = vst [vmem:[#allocation2 + $0x40] sm:$0xff] 0.0
          %283 = vst [vmem:[#allocation2 + $0x48] sm:$0xff] 0.0
          %284 = vst [vmem:[#allocation2 + $0x50] sm:$0xff] 0.0
          %285 = vst [vmem:[#allocation2 + $0x58] sm:$0xff] 0.0
          %286 = vst [vmem:[#allocation2 + $0x60] sm:$0xff] 0.0
          %287 = vst [vmem:[#allocation2 + $0x68] sm:$0xff] 0.0
          %288 = vst [vmem:[#allocation2 + $0x70] sm:$0xff] 0.0
          %289 = vst [vmem:[#allocation2 + $0x78] sm:$0xff] 0.0
        $region44: #{tpu_custom_call.1} parent=31 // pred_fallthru
          _
        %v290 = vld [vmem:[#allocation2] sm:$0xff]
        %v291 = vld [vmem:[#allocation2 + $0x8] sm:$0xff]
        %v292 = vld [vmem:[#allocation2 + $0x10] sm:$0xff]
        %v293 = vld [vmem:[#allocation2 + $0x18] sm:$0xff]
        %v294 = vld [vmem:[#allocation2 + $0x20] sm:$0xff]
        %v295 = vld [vmem:[#allocation2 + $0x28] sm:$0xff]
        %v296 = vld [vmem:[#allocation2 + $0x30] sm:$0xff]
        %v297 = vld [vmem:[#allocation2 + $0x38] sm:$0xff]
        %v298 = vld [vmem:[#allocation2 + $0x40] sm:$0xff]
        %v299 = vld [vmem:[#allocation2 + $0x48] sm:$0xff]
        %v300 = vld [vmem:[#allocation2 + $0x50] sm:$0xff]
        %v301 = vld [vmem:[#allocation2 + $0x58] sm:$0xff]
        %v302 = vld [vmem:[#allocation2 + $0x60] sm:$0xff]
        %v303 = vld [vmem:[#allocation2 + $0x68] sm:$0xff]
        %v304 = vld [vmem:[#allocation2 + $0x70] sm:$0xff]
        %v305 = vld [vmem:[#allocation2 + $0x78] sm:$0xff]
        %v306 = vld [vmem:[%s227] sm:$0xff]
        %v307 = vld [vmem:[%s227 + $0x8] sm:$0xff]
        %v308 = vld [vmem:[%s227 + $0x10] sm:$0xff]
        %v309 = vld [vmem:[%s227 + $0x18] sm:$0xff]
        %v310 = vld [vmem:[%s227 + $0x20] sm:$0xff]
        %v311 = vld [vmem:[%s227 + $0x28] sm:$0xff]
        %v312 = vld [vmem:[%s227 + $0x30] sm:$0xff]
        %v313 = vld [vmem:[%s227 + $0x38] sm:$0xff]
        %v314 = vld [vmem:[%s227 + $0x40] sm:$0xff]
        %v315 = vld [vmem:[%s227 + $0x48] sm:$0xff]
        %v316 = vld [vmem:[%s227 + $0x50] sm:$0xff]
        %v317 = vld [vmem:[%s227 + $0x58] sm:$0xff]
        %v318 = vld [vmem:[%s227 + $0x60] sm:$0xff]
        %v319 = vld [vmem:[%s227 + $0x68] sm:$0xff]
        %v320 = vld [vmem:[%s227 + $0x70] sm:$0xff]
        %v321 = vld [vmem:[%s227 + $0x78] sm:$0xff]
        %v322 = vld [vmem:[%s227 + $0x80] sm:$0xff]
        %v323 = vld [vmem:[%s227 + $0x88] sm:$0xff]
        %v324 = vld [vmem:[%s227 + $0x90] sm:$0xff]
        %v325 = vld [vmem:[%s227 + $0x98] sm:$0xff]
        %v326 = vld [vmem:[%s227 + $0xa0] sm:$0xff]
        %v327 = vld [vmem:[%s227 + $0xa8] sm:$0xff]
        %v328 = vld [vmem:[%s227 + $0xb0] sm:$0xff]
        %v329 = vld [vmem:[%s227 + $0xb8] sm:$0xff]
        %v330 = vld [vmem:[%s227 + $0xc0] sm:$0xff]
        %v331 = vld [vmem:[%s227 + $0xc8] sm:$0xff]
        %v332 = vld [vmem:[%s227 + $0xd0] sm:$0xff]
        %v333 = vld [vmem:[%s227 + $0xd8] sm:$0xff]
        %v334 = vld [vmem:[%s227 + $0xe0] sm:$0xff]
        %v335 = vld [vmem:[%s227 + $0xe8] sm:$0xff]
        %v336 = vld [vmem:[%s227 + $0xf0] sm:$0xff]
        %v337 = vld [vmem:[%s227 + $0xf8] sm:$0xff]
        %v338 = vld [vmem:[%s236] sm:$0xf]
        %v339 = vld [vmem:[%s236 + $0x4] sm:$0xf]
        %v340 = vld [vmem:[%s236 + $0x8] sm:$0xf]
        %v341 = vld [vmem:[%s236 + $0xc] sm:$0xf]
        %v342 = vld [vmem:[%s236 + $0x10] sm:$0xf]
        %v343 = vld [vmem:[%s236 + $0x14] sm:$0xf]
        %v344 = vld [vmem:[%s236 + $0x18] sm:$0xf]
        %v345 = vld [vmem:[%s236 + $0x1c] sm:$0xf]
        %v346 = vld [vmem:[%s236 + $0x20] sm:$0xf]
        %v347 = vld [vmem:[%s236 + $0x24] sm:$0xf]
        %v348 = vld [vmem:[%s236 + $0x28] sm:$0xf]
        %v349 = vld [vmem:[%s236 + $0x2c] sm:$0xf]
        %v350 = vld [vmem:[%s236 + $0x30] sm:$0xf]
        %v351 = vld [vmem:[%s236 + $0x34] sm:$0xf]
        %v352 = vld [vmem:[%s236 + $0x38] sm:$0xf]
        %v353 = vld [vmem:[%s236 + $0x3c] sm:$0xf]
        %v354 = vld [vmem:[%s236 + $0x40] sm:$0xf]
        %v355 = vld [vmem:[%s236 + $0x44] sm:$0xf]
        %v356 = vld [vmem:[%s236 + $0x48] sm:$0xf]
        %v357 = vld [vmem:[%s236 + $0x4c] sm:$0xf]
        %v358 = vld [vmem:[%s236 + $0x50] sm:$0xf]
        %v359 = vld [vmem:[%s236 + $0x54] sm:$0xf]
        %v360 = vld [vmem:[%s236 + $0x58] sm:$0xf]
        %v361 = vld [vmem:[%s236 + $0x5c] sm:$0xf]
        %v362 = vld [vmem:[%s236 + $0x60] sm:$0xf]
        %v363 = vld [vmem:[%s236 + $0x64] sm:$0xf]
        %v364 = vld [vmem:[%s236 + $0x68] sm:$0xf]
        %v365 = vld [vmem:[%s236 + $0x6c] sm:$0xf]
        %v366 = vld [vmem:[%s236 + $0x70] sm:$0xf]
        %v367 = vld [vmem:[%s236 + $0x74] sm:$0xf]
        %v368 = vld [vmem:[%s236 + $0x78] sm:$0xf]
        %v369 = vld [vmem:[%s236 + $0x7c] sm:$0xf]
        %v370 = vld [vmem:[%s236 + $0x80] sm:$0xf]
        %v371 = vld [vmem:[%s236 + $0x84] sm:$0xf]
        %v372 = vld [vmem:[%s236 + $0x88] sm:$0xf]
        %v373 = vld [vmem:[%s236 + $0x8c] sm:$0xf]
        %v374 = vld [vmem:[%s236 + $0x90] sm:$0xf]
        %v375 = vld [vmem:[%s236 + $0x94] sm:$0xf]
        %v376 = vld [vmem:[%s236 + $0x98] sm:$0xf]
        %v377 = vld [vmem:[%s236 + $0x9c] sm:$0xf]
        %v378 = vld [vmem:[%s236 + $0xa0] sm:$0xf]
        %v379 = vld [vmem:[%s236 + $0xa4] sm:$0xf]
        %v380 = vld [vmem:[%s236 + $0xa8] sm:$0xf]
        %v381 = vld [vmem:[%s236 + $0xac] sm:$0xf]
        %v382 = vld [vmem:[%s236 + $0xb0] sm:$0xf]
        %v383 = vld [vmem:[%s236 + $0xb4] sm:$0xf]
        %v384 = vld [vmem:[%s236 + $0xb8] sm:$0xf]
        %v385 = vld [vmem:[%s236 + $0xbc] sm:$0xf]
        %v386 = vld [vmem:[%s236 + $0xc0] sm:$0xf]
        %v387 = vld [vmem:[%s236 + $0xc4] sm:$0xf]
        %v388 = vld [vmem:[%s236 + $0xc8] sm:$0xf]
        %v389 = vld [vmem:[%s236 + $0xcc] sm:$0xf]
        %v390 = vld [vmem:[%s236 + $0xd0] sm:$0xf]
        %v391 = vld [vmem:[%s236 + $0xd4] sm:$0xf]
        %v392 = vld [vmem:[%s236 + $0xd8] sm:$0xf]
        %v393 = vld [vmem:[%s236 + $0xdc] sm:$0xf]
        %v394 = vld [vmem:[%s236 + $0xe0] sm:$0xf]
        %v395 = vld [vmem:[%s236 + $0xe4] sm:$0xf]
        %v396 = vld [vmem:[%s236 + $0xe8] sm:$0xf]
        %v397 = vld [vmem:[%s236 + $0xec] sm:$0xf]
        %v398 = vld [vmem:[%s236 + $0xf0] sm:$0xf]
        %v399 = vld [vmem:[%s236 + $0xf4] sm:$0xf]
        %v400 = vld [vmem:[%s236 + $0xf8] sm:$0xf]
        %v401 = vld [vmem:[%s236 + $0xfc] sm:$0xf]
        %v434 = vunpack.c.l.b16 %v306
        %v435 = vunpack.c.h.b16 %v306
        %v436 = vunpack.c.l.b16 %v307
        %v437 = vunpack.c.h.b16 %v307
        %v438 = vunpack.c.l.b16 %v308
        %v439 = vunpack.c.h.b16 %v308
        %v440 = vunpack.c.l.b16 %v309
        %v441 = vunpack.c.h.b16 %v309
        %v442 = vunpack.c.l.b16 %v310
        %v443 = vunpack.c.h.b16 %v310
        %v444 = vunpack.c.l.b16 %v311
        %v445 = vunpack.c.h.b16 %v311
        %v446 = vunpack.c.l.b16 %v312
        %v447 = vunpack.c.h.b16 %v312
        %v448 = vunpack.c.l.b16 %v313
        %v449 = vunpack.c.h.b16 %v313
        %v450 = vunpack.c.l.b16 %v314
        %v451 = vunpack.c.h.b16 %v314
        %v452 = vunpack.c.l.b16 %v315
        %v453 = vunpack.c.h.b16 %v315
        %v454 = vunpack.c.l.b16 %v316
        %v455 = vunpack.c.h.b16 %v316
        %v456 = vunpack.c.l.b16 %v317
        %v457 = vunpack.c.h.b16 %v317
        %v458 = vunpack.c.l.b16 %v318
        %v459 = vunpack.c.h.b16 %v318
        %v460 = vunpack.c.l.b16 %v319
        %v461 = vunpack.c.h.b16 %v319
        %v462 = vunpack.c.l.b16 %v320
        %v463 = vunpack.c.h.b16 %v320
        %v464 = vunpack.c.l.b16 %v321
        %v465 = vunpack.c.h.b16 %v321
        %v466 = vunpack.c.l.b16 %v322
        %v467 = vunpack.c.h.b16 %v322
        %v468 = vunpack.c.l.b16 %v323
        %v469 = vunpack.c.h.b16 %v323
        %v470 = vunpack.c.l.b16 %v324
        %v471 = vunpack.c.h.b16 %v324
        %v472 = vunpack.c.l.b16 %v325
        %v473 = vunpack.c.h.b16 %v325
        %v474 = vunpack.c.l.b16 %v326
        %v475 = vunpack.c.h.b16 %v326
        %v476 = vunpack.c.l.b16 %v327
        %v477 = vunpack.c.h.b16 %v327
        %v478 = vunpack.c.l.b16 %v328
        %v479 = vunpack.c.h.b16 %v328
        %v480 = vunpack.c.l.b16 %v329
        %v481 = vunpack.c.h.b16 %v329
        %v482 = vunpack.c.l.b16 %v330
        %v483 = vunpack.c.h.b16 %v330
        %v484 = vunpack.c.l.b16 %v331
        %v485 = vunpack.c.h.b16 %v331
        %v486 = vunpack.c.l.b16 %v332
        %v487 = vunpack.c.h.b16 %v332
        %v488 = vunpack.c.l.b16 %v333
        %v489 = vunpack.c.h.b16 %v333
        %v490 = vunpack.c.l.b16 %v334
        %v491 = vunpack.c.h.b16 %v334
        %v492 = vunpack.c.l.b16 %v335
        %v493 = vunpack.c.h.b16 %v335
        %v494 = vunpack.c.l.b16 %v336
        %v495 = vunpack.c.h.b16 %v336
        %v496 = vunpack.c.l.b16 %v337
        %v497 = vunpack.c.h.b16 %v337
        %v498 = vpack.c.b16 %v438, %v434
        %v499 = vpack.c.b16 %v439, %v435
        %v500 = vpack.c.b16 %v440, %v436
        %v501 = vpack.c.b16 %v441, %v437
        %v502 = vpack.c.b16 %v446, %v442
        %v503 = vpack.c.b16 %v447, %v443
        %v504 = vpack.c.b16 %v448, %v444
        %v505 = vpack.c.b16 %v449, %v445
        %v506 = vpack.c.b16 %v454, %v450
        %v507 = vpack.c.b16 %v455, %v451
        %v508 = vpack.c.b16 %v456, %v452
        %v509 = vpack.c.b16 %v457, %v453
        %v510 = vpack.c.b16 %v462, %v458
        %v511 = vpack.c.b16 %v463, %v459
        %v512 = vpack.c.b16 %v464, %v460
        %v513 = vpack.c.b16 %v465, %v461
        %v514 = vpack.c.b16 %v470, %v466
        %v515 = vpack.c.b16 %v471, %v467
        %v516 = vpack.c.b16 %v472, %v468
        %v517 = vpack.c.b16 %v473, %v469
        %v518 = vpack.c.b16 %v478, %v474
        %v519 = vpack.c.b16 %v479, %v475
        %v520 = vpack.c.b16 %v480, %v476
        %v521 = vpack.c.b16 %v481, %v477
        %v522 = vpack.c.b16 %v486, %v482
        %v523 = vpack.c.b16 %v487, %v483
        %v524 = vpack.c.b16 %v488, %v484
        %v525 = vpack.c.b16 %v489, %v485
        %v526 = vpack.c.b16 %v494, %v490
        %v527 = vpack.c.b16 %v495, %v491
        %v528 = vpack.c.b16 %v496, %v492
        %v529 = vpack.c.b16 %v497, %v493
        %v626 = vunpack.c.l.b16 %v338
        %v627 = vunpack.c.l.b16 %v339
        %v628 = vunpack.c.l.b16 %v340
        %v629 = vunpack.c.l.b16 %v341
        %v630 = vunpack.c.l.b16 %v342
        %v631 = vunpack.c.l.b16 %v343
        %v632 = vunpack.c.l.b16 %v344
        %v633 = vunpack.c.l.b16 %v345
        %v634 = vunpack.c.l.b16 %v346
        %v635 = vunpack.c.l.b16 %v347
        %v636 = vunpack.c.l.b16 %v348
        %v637 = vunpack.c.l.b16 %v349
        %v638 = vunpack.c.l.b16 %v350
        %v639 = vunpack.c.l.b16 %v351
        %v640 = vunpack.c.l.b16 %v352
        %v641 = vunpack.c.l.b16 %v353
        %v642 = vunpack.c.l.b16 %v354
        %v643 = vunpack.c.l.b16 %v355
        %v644 = vunpack.c.l.b16 %v356
        %v645 = vunpack.c.l.b16 %v357
        %v646 = vunpack.c.l.b16 %v358
        %v647 = vunpack.c.l.b16 %v359
        %v648 = vunpack.c.l.b16 %v360
        %v649 = vunpack.c.l.b16 %v361
        %v650 = vunpack.c.l.b16 %v362
        %v651 = vunpack.c.l.b16 %v363
        %v652 = vunpack.c.l.b16 %v364
        %v653 = vunpack.c.l.b16 %v365
        %v654 = vunpack.c.l.b16 %v366
        %v655 = vunpack.c.l.b16 %v367
        %v656 = vunpack.c.l.b16 %v368
        %v657 = vunpack.c.l.b16 %v369
        %v658 = vunpack.c.l.b16 %v370
        %v659 = vunpack.c.l.b16 %v371
        %v660 = vunpack.c.l.b16 %v372
        %v661 = vunpack.c.l.b16 %v373
        %v662 = vunpack.c.l.b16 %v374
        %v663 = vunpack.c.l.b16 %v375
        %v664 = vunpack.c.l.b16 %v376
        %v665 = vunpack.c.l.b16 %v377
        %v666 = vunpack.c.l.b16 %v378
        %v667 = vunpack.c.l.b16 %v379
        %v668 = vunpack.c.l.b16 %v380
        %v669 = vunpack.c.l.b16 %v381
        %v670 = vunpack.c.l.b16 %v382
        %v671 = vunpack.c.l.b16 %v383
        %v672 = vunpack.c.l.b16 %v384
        %v673 = vunpack.c.l.b16 %v385
        %v674 = vunpack.c.l.b16 %v386
        %v675 = vunpack.c.l.b16 %v387
        %v676 = vunpack.c.l.b16 %v388
        %v677 = vunpack.c.l.b16 %v389
        %v678 = vunpack.c.l.b16 %v390
        %v679 = vunpack.c.l.b16 %v391
        %v680 = vunpack.c.l.b16 %v392
        %v681 = vunpack.c.l.b16 %v393
        %v682 = vunpack.c.l.b16 %v394
        %v683 = vunpack.c.l.b16 %v395
        %v684 = vunpack.c.l.b16 %v396
        %v685 = vunpack.c.l.b16 %v397
        %v686 = vunpack.c.l.b16 %v398
        %v687 = vunpack.c.l.b16 %v399
        %v688 = vunpack.c.l.b16 %v400
        %v689 = vunpack.c.l.b16 %v401
        %v690 = vpack.c.b16 %v627, %v626
        %v691 = vpack.c.b16 %v629, %v628
        %v692 = vpack.c.b16 %v631, %v630
        %v693 = vpack.c.b16 %v633, %v632
        %v694 = vpack.c.b16 %v635, %v634
        %v695 = vpack.c.b16 %v637, %v636
        %v696 = vpack.c.b16 %v639, %v638
        %v697 = vpack.c.b16 %v641, %v640
        %v698 = vpack.c.b16 %v643, %v642
        %v699 = vpack.c.b16 %v645, %v644
        %v700 = vpack.c.b16 %v647, %v646
        %v701 = vpack.c.b16 %v649, %v648
        %v702 = vpack.c.b16 %v651, %v650
        %v703 = vpack.c.b16 %v653, %v652
        %v704 = vpack.c.b16 %v655, %v654
        %v705 = vpack.c.b16 %v657, %v656
        %v706 = vpack.c.b16 %v659, %v658
        %v707 = vpack.c.b16 %v661, %v660
        %v708 = vpack.c.b16 %v663, %v662
        %v709 = vpack.c.b16 %v665, %v664
        %v710 = vpack.c.b16 %v667, %v666
        %v711 = vpack.c.b16 %v669, %v668
        %v712 = vpack.c.b16 %v671, %v670
        %v713 = vpack.c.b16 %v673, %v672
        %v714 = vpack.c.b16 %v675, %v674
        %v715 = vpack.c.b16 %v677, %v676
        %v716 = vpack.c.b16 %v679, %v678
        %v717 = vpack.c.b16 %v681, %v680
        %v718 = vpack.c.b16 %v683, %v682
        %v719 = vpack.c.b16 %v685, %v684
        %v720 = vpack.c.b16 %v687, %v686
        %v721 = vpack.c.b16 %v689, %v688
        %754 = vmatprep.subr.bf16.mxu0 0
        %755 = vmatpush1.bf16.msra.mxu0 %v690
        %756 = vmatprep.subr.bf16.mxu0 0
        %757 = vmatpush1.bf16.msra.mxu0 %v691
        %758 = vmatprep.subr.bf16.mxu0 0
        %759 = vmatpush1.bf16.msra.mxu0 %v692
        %760 = vmatprep.subr.bf16.mxu0 0
        %761 = vmatpush1.bf16.msra.mxu0 %v693
        %762 = vmatprep.subr.bf16.mxu0 0
        %763 = vmatpush1.bf16.msra.mxu0 %v694
        %764 = vmatprep.subr.bf16.mxu0 0
        %765 = vmatpush1.bf16.msra.mxu0 %v695
        %766 = vmatprep.subr.bf16.mxu0 0
        %767 = vmatpush1.bf16.msra.mxu0 %v696
        %768 = vmatprep.subr.bf16.mxu0 0
        %769 = vmatpush1.bf16.msra.mxu0 %v697
        %770 = vmatprep.subr.bf16.mxu0 0
        %771 = vmatpush1.bf16.msra.mxu0 %v698
        %772 = vmatprep.subr.bf16.mxu0 0
        %773 = vmatpush1.bf16.msra.mxu0 %v699
        %774 = vmatprep.subr.bf16.mxu0 0
        %775 = vmatpush1.bf16.msra.mxu0 %v700
        %776 = vmatprep.subr.bf16.mxu0 0
        %777 = vmatpush1.bf16.msra.mxu0 %v701
        %778 = vmatprep.subr.bf16.mxu0 0
        %779 = vmatpush1.bf16.msra.mxu0 %v702
        %780 = vmatprep.subr.bf16.mxu0 0
        %781 = vmatpush1.bf16.msra.mxu0 %v703
        %782 = vmatprep.subr.bf16.mxu0 0
        %783 = vmatpush1.bf16.msra.mxu0 %v704
        %784 = vmatprep.subr.bf16.mxu0 0
        %785 = vmatpush1.bf16.msra.mxu0 %v705
        %786 = vmatprep.mubr.bf16.mxu0 %v499
        %787 = vmatmul.mubr.bf16.gmra.mrb[0].mxu0 %v498
        %v788 = vpop.f32.mrb[0].mxu0
        %v789 = vadd.f32 0.0, %v788
        %v790 = vpop.f32.mrb[0].mxu0
        %v791 = vpop.f32.mrb[0].mxu0
        %v792 = vadd.f32 0.0, %v791
        %v793 = vpop.f32.mrb[0].mxu0
        %794 = vmatprep.mubr.bf16.mxu0 %v503
        %795 = vmatmul.mubr.bf16.gmra.mrb[0].mxu0 %v502
        %v796 = vpop.f32.mrb[0].mxu0
        %v797 = vadd.f32 0.0, %v796
        %v798 = vpop.f32.mrb[0].mxu0
        %v799 = vpop.f32.mrb[0].mxu0
        %v800 = vadd.f32 0.0, %v799
        %v801 = vpop.f32.mrb[0].mxu0
        %802 = vmatprep.mubr.bf16.mxu0 %v507
        %803 = vmatmul.mubr.bf16.gmra.mrb[0].mxu0 %v506
        %v804 = vpop.f32.mrb[0].mxu0
        %v805 = vadd.f32 0.0, %v804
        %v806 = vpop.f32.mrb[0].mxu0
        %v807 = vpop.f32.mrb[0].mxu0
        %v808 = vadd.f32 0.0, %v807
        %v809 = vpop.f32.mrb[0].mxu0
        %810 = vmatprep.mubr.bf16.mxu0 %v511
        %811 = vmatmul.mubr.bf16.gmra.mrb[0].mxu0 %v510
        %v812 = vpop.f32.mrb[0].mxu0
        %v813 = vadd.f32 0.0, %v812
        %v814 = vpop.f32.mrb[0].mxu0
        %v815 = vpop.f32.mrb[0].mxu0
        %v816 = vadd.f32 0.0, %v815
        %v817 = vpop.f32.mrb[0].mxu0
        %818 = vmatprep.mubr.bf16.mxu0 %v515
        %819 = vmatmul.mubr.bf16.gmra.mrb[0].mxu0 %v514
        %v820 = vpop.f32.mrb[0].mxu0
        %v821 = vadd.f32 0.0, %v820
        %v822 = vpop.f32.mrb[0].mxu0
        %v823 = vpop.f32.mrb[0].mxu0
        %v824 = vadd.f32 0.0, %v823
        %v825 = vpop.f32.mrb[0].mxu0
        %826 = vmatprep.mubr.bf16.mxu0 %v519
        %827 = vmatmul.mubr.bf16.gmra.mrb[0].mxu0 %v518
        %v828 = vpop.f32.mrb[0].mxu0
        %v829 = vadd.f32 0.0, %v828
        %v830 = vpop.f32.mrb[0].mxu0
        %v831 = vpop.f32.mrb[0].mxu0
        %v832 = vadd.f32 0.0, %v831
        %v833 = vpop.f32.mrb[0].mxu0
        %834 = vmatprep.mubr.bf16.mxu0 %v523
        %835 = vmatmul.mubr.bf16.gmra.mrb[0].mxu0 %v522
        %v836 = vpop.f32.mrb[0].mxu0
        %v837 = vadd.f32 0.0, %v836
        %v838 = vpop.f32.mrb[0].mxu0
        %v839 = vpop.f32.mrb[0].mxu0
        %v840 = vadd.f32 0.0, %v839
        %v841 = vpop.f32.mrb[0].mxu0
        %842 = vmatprep.mubr.bf16.mxu0 %v527
        %843 = vmatmul.mubr.bf16.gmra.mrb[0].mxu0 %v526
        %v844 = vpop.f32.mrb[0].mxu0
        %v845 = vadd.f32 0.0, %v844
        %v846 = vpop.f32.mrb[0].mxu0
        %v847 = vpop.f32.mrb[0].mxu0
        %v848 = vadd.f32 0.0, %v847
        %v849 = vpop.f32.mrb[0].mxu0
        %850 = vdwg.mxu0
        %851 = vmatprep.subr.bf16.mxu0 0
        %852 = vmatpush1.bf16.msra.mxu0 %v706
        %853 = vmatprep.subr.bf16.mxu0 0
        %854 = vmatpush1.bf16.msra.mxu0 %v707
        %855 = vmatprep.subr.bf16.mxu0 0
        %856 = vmatpush1.bf16.msra.mxu0 %v708
        %857 = vmatprep.subr.bf16.mxu0 0
        %858 = vmatpush1.bf16.msra.mxu0 %v709
        %859 = vmatprep.subr.bf16.mxu0 0
        %860 = vmatpush1.bf16.msra.mxu0 %v710
        %861 = vmatprep.subr.bf16.mxu0 0
        %862 = vmatpush1.bf16.msra.mxu0 %v711
        %863 = vmatprep.subr.bf16.mxu0 0
        %864 = vmatpush1.bf16.msra.mxu0 %v712
        %865 = vmatprep.subr.bf16.mxu0 0
        %866 = vmatpush1.bf16.msra.mxu0 %v713
        %867 = vmatprep.subr.bf16.mxu0 0
        %868 = vmatpush1.bf16.msra.mxu0 %v714
        %869 = vmatprep.subr.bf16.mxu0 0
        %870 = vmatpush1.bf16.msra.mxu0 %v715
        %871 = vmatprep.subr.bf16.mxu0 0
        %872 = vmatpush1.bf16.msra.mxu0 %v716
        %873 = vmatprep.subr.bf16.mxu0 0
        %874 = vmatpush1.bf16.msra.mxu0 %v717
        %875 = vmatprep.subr.bf16.mxu0 0
        %876 = vmatpush1.bf16.msra.mxu0 %v718
        %877 = vmatprep.subr.bf16.mxu0 0
        %878 = vmatpush1.bf16.msra.mxu0 %v719
        %879 = vmatprep.subr.bf16.mxu0 0
        %880 = vmatpush1.bf16.msra.mxu0 %v720
        %881 = vmatprep.subr.bf16.mxu0 0
        %882 = vmatpush1.bf16.msra.mxu0 %v721
        %883 = vmatprep.mubr.bf16.mxu0 %v501
        %884 = vmatmul.mubr.bf16.gmra.mrb[0].mxu0 %v500
        %v885 = vpop.f32.mrb[0].mxu0
        %v886 = vadd.f32 %v789, %v885
        %v887 = vpop.f32.mrb[0].mxu0
        %v888 = vpop.f32.mrb[0].mxu0
        %v889 = vadd.f32 %v792, %v888
        %v890 = vpop.f32.mrb[0].mxu0
        %891 = vmatprep.mubr.bf16.mxu0 %v505
        %892 = vmatmul.mubr.bf16.gmra.mrb[0].mxu0 %v504
        %v893 = vpop.f32.mrb[0].mxu0
        %v894 = vadd.f32 %v797, %v893
        %v895 = vpop.f32.mrb[0].mxu0
        %v896 = vpop.f32.mrb[0].mxu0
        %v897 = vadd.f32 %v800, %v896
        %v898 = vpop.f32.mrb[0].mxu0
        %899 = vmatprep.mubr.bf16.mxu0 %v509
        %900 = vmatmul.mubr.bf16.gmra.mrb[0].mxu0 %v508
        %v901 = vpop.f32.mrb[0].mxu0
        %v902 = vadd.f32 %v805, %v901
        %v903 = vpop.f32.mrb[0].mxu0
        %v904 = vpop.f32.mrb[0].mxu0
        %v905 = vadd.f32 %v808, %v904
        %v906 = vpop.f32.mrb[0].mxu0
        %907 = vmatprep.mubr.bf16.mxu0 %v513
        %908 = vmatmul.mubr.bf16.gmra.mrb[0].mxu0 %v512
        %v909 = vpop.f32.mrb[0].mxu0
        %v910 = vadd.f32 %v813, %v909
        %v911 = vpop.f32.mrb[0].mxu0
        %v912 = vpop.f32.mrb[0].mxu0
        %v913 = vadd.f32 %v816, %v912
        %v914 = vpop.f32.mrb[0].mxu0
        %915 = vmatprep.mubr.bf16.mxu0 %v517
        %916 = vmatmul.mubr.bf16.gmra.mrb[0].mxu0 %v516
        %v917 = vpop.f32.mrb[0].mxu0
        %v918 = vadd.f32 %v821, %v917
        %v919 = vpop.f32.mrb[0].mxu0
        %v920 = vpop.f32.mrb[0].mxu0
        %v921 = vadd.f32 %v824, %v920
        %v922 = vpop.f32.mrb[0].mxu0
        %923 = vmatprep.mubr.bf16.mxu0 %v521
        %924 = vmatmul.mubr.bf16.gmra.mrb[0].mxu0 %v520
        %v925 = vpop.f32.mrb[0].mxu0
        %v926 = vadd.f32 %v829, %v925
        %v927 = vpop.f32.mrb[0].mxu0
        %v928 = vpop.f32.mrb[0].mxu0
        %v929 = vadd.f32 %v832, %v928
        %v930 = vpop.f32.mrb[0].mxu0
        %931 = vmatprep.mubr.bf16.mxu0 %v525
        %932 = vmatmul.mubr.bf16.gmra.mrb[0].mxu0 %v524
        %v933 = vpop.f32.mrb[0].mxu0
        %v934 = vadd.f32 %v837, %v933
        %v935 = vpop.f32.mrb[0].mxu0
        %v936 = vpop.f32.mrb[0].mxu0
        %v937 = vadd.f32 %v840, %v936
        %v938 = vpop.f32.mrb[0].mxu0
        %939 = vmatprep.mubr.bf16.mxu0 %v529
        %940 = vmatmul.mubr.bf16.gmra.mrb[0].mxu0 %v528
        %v941 = vpop.f32.mrb[0].mxu0
        %v942 = vadd.f32 %v845, %v941
        %v943 = vpop.f32.mrb[0].mxu0
        %v944 = vpop.f32.mrb[0].mxu0
        %v945 = vadd.f32 %v848, %v944
        %v946 = vpop.f32.mrb[0].mxu0
        %947 = vdwg.mxu0
        %v948 = vadd.f32 %v290, %v886
        %v949 = vadd.f32 %v291, %v889
        %v950 = vadd.f32 %v292, %v894
        %v951 = vadd.f32 %v293, %v897
        %v952 = vadd.f32 %v294, %v902
        %v953 = vadd.f32 %v295, %v905
        %v954 = vadd.f32 %v296, %v910
        %v955 = vadd.f32 %v297, %v913
        %v956 = vadd.f32 %v298, %v918
        %v957 = vadd.f32 %v299, %v921
        %v958 = vadd.f32 %v300, %v926
        %v959 = vadd.f32 %v301, %v929
        %v960 = vadd.f32 %v302, %v934
        %v961 = vadd.f32 %v303, %v937
        %v962 = vadd.f32 %v304, %v942
        %v963 = vadd.f32 %v305, %v945
        %964 = vst [vmem:[#allocation2] sm:$0xff] %v948
        %965 = vst [vmem:[#allocation2 + $0x8] sm:$0xff] %v949
        %966 = vst [vmem:[#allocation2 + $0x10] sm:$0xff] %v950
        %967 = vst [vmem:[#allocation2 + $0x18] sm:$0xff] %v951
        %968 = vst [vmem:[#allocation2 + $0x20] sm:$0xff] %v952
        %969 = vst [vmem:[#allocation2 + $0x28] sm:$0xff] %v953
        %970 = vst [vmem:[#allocation2 + $0x30] sm:$0xff] %v954
        %971 = vst [vmem:[#allocation2 + $0x38] sm:$0xff] %v955
        %972 = vst [vmem:[#allocation2 + $0x40] sm:$0xff] %v956
        %973 = vst [vmem:[#allocation2 + $0x48] sm:$0xff] %v957
        %974 = vst [vmem:[#allocation2 + $0x50] sm:$0xff] %v958
        %975 = vst [vmem:[#allocation2 + $0x58] sm:$0xff] %v959
        %976 = vst [vmem:[#allocation2 + $0x60] sm:$0xff] %v960
        %977 = vst [vmem:[#allocation2 + $0x68] sm:$0xff] %v961
        %978 = vst [vmem:[#allocation2 + $0x70] sm:$0xff] %v962
        %979 = vst [vmem:[#allocation2 + $0x78] sm:$0xff] %v963
        %p980 = scmp.eq.s32.totalorder %s28, 1
        // Predicated region
        $region45: #{tpu_custom_call.1} parent=31 // pred_check
          %p981 = pneg %p980
        $region46: #{tpu_custom_call.1} parent=31 // pred_check_branch
          %983 = sbr.rel (%p981) target = $region48
        $region47: #{tpu_custom_call.1} parent=31 // pred_region
          %v984 = vld [vmem:[#allocation2] sm:$0xff]
          %v985 = vld [vmem:[#allocation2 + $0x8] sm:$0xff]
          %v986 = vld [vmem:[#allocation2 + $0x10] sm:$0xff]
          %v987 = vld [vmem:[#allocation2 + $0x18] sm:$0xff]
          %v988 = vld [vmem:[#allocation2 + $0x20] sm:$0xff]
          %v989 = vld [vmem:[#allocation2 + $0x28] sm:$0xff]
          %v990 = vld [vmem:[#allocation2 + $0x30] sm:$0xff]
          %v991 = vld [vmem:[#allocation2 + $0x38] sm:$0xff]
          %v992 = vld [vmem:[#allocation2 + $0x40] sm:$0xff]
          %v993 = vld [vmem:[#allocation2 + $0x48] sm:$0xff]
          %v994 = vld [vmem:[#allocation2 + $0x50] sm:$0xff]
          %v995 = vld [vmem:[#allocation2 + $0x58] sm:$0xff]
          %v996 = vld [vmem:[#allocation2 + $0x60] sm:$0xff]
          %v997 = vld [vmem:[#allocation2 + $0x68] sm:$0xff]
          %v998 = vld [vmem:[#allocation2 + $0x70] sm:$0xff]
          %v999 = vld [vmem:[#allocation2 + $0x78] sm:$0xff]
          %v1000 = vld [vmem:[%s267] sm:$0x1]
          %v1002 = vlaneseq
          %v1003 = vshrl.u32 %v1002, 7
          %v1004 = vsub.s32 0, %v1003
          %v1005 = vrot.slane %v1000, %v1004
          %v1007 = vadd.f32 %v984, %v1005
          %v1008 = vadd.f32 %v985, %v1005
          %v1009 = vadd.f32 %v986, %v1005
          %v1010 = vadd.f32 %v987, %v1005
          %v1011 = vadd.f32 %v988, %v1005
          %v1012 = vadd.f32 %v989, %v1005
          %v1013 = vadd.f32 %v990, %v1005
          %v1014 = vadd.f32 %v991, %v1005
          %v1015 = vadd.f32 %v992, %v1005
          %v1016 = vadd.f32 %v993, %v1005
          %v1017 = vadd.f32 %v994, %v1005
          %v1018 = vadd.f32 %v995, %v1005
          %v1019 = vadd.f32 %v996, %v1005
          %v1020 = vadd.f32 %v997, %v1005
          %v1021 = vadd.f32 %v998, %v1005
          %v1022 = vadd.f32 %v999, %v1005
          %1023 = vst [vmem:[#allocation8] sm:$0xff] %v1007
          %1024 = vst [vmem:[#allocation8 + $0x8] sm:$0xff] %v1008
          %1025 = vst [vmem:[#allocation8 + $0x10] sm:$0xff] %v1009
          %1026 = vst [vmem:[#allocation8 + $0x18] sm:$0xff] %v1010
          %1027 = vst [vmem:[#allocation8 + $0x20] sm:$0xff] %v1011
          %1028 = vst [vmem:[#allocation8 + $0x28] sm:$0xff] %v1012
          %1029 = vst [vmem:[#allocation8 + $0x30] sm:$0xff] %v1013
          %1030 = vst [vmem:[#allocation8 + $0x38] sm:$0xff] %v1014
          %1031 = vst [vmem:[#allocation8 + $0x40] sm:$0xff] %v1015
          %1032 = vst [vmem:[#allocation8 + $0x48] sm:$0xff] %v1016
          %1033 = vst [vmem:[#allocation8 + $0x50] sm:$0xff] %v1017
          %1034 = vst [vmem:[#allocation8 + $0x58] sm:$0xff] %v1018
          %1035 = vst [vmem:[#allocation8 + $0x60] sm:$0xff] %v1019
          %1036 = vst [vmem:[#allocation8 + $0x68] sm:$0xff] %v1020
          %1037 = vst [vmem:[#allocation8 + $0x70] sm:$0xff] %v1021
          %1038 = vst [vmem:[#allocation8 + $0x78] sm:$0xff] %v1022
        $region48: #{tpu_custom_call.1} parent=31 // pred_fallthru
          _
        // Predicated region
        $region49: #{tpu_custom_call.1} parent=31 // pred_check
          %p1039 = pneg %p142
        $region50: #{tpu_custom_call.1} parent=31 // pred_check_branch
          %1041 = sbr.rel (%p1039) target = $region52
        $region51: #{tpu_custom_call.1} parent=31 // pred_region
          %s1042 = smul.u32 16, %s26
          %s1044 = ssub.s32 2048, 2048
          %1045 = vsyncadd [#allocation5], %s1044
          %s1046 = sadd.s32 %s27, %s1042
          %s1047 = smul.addr %s1046, 128
          %s1048 = scalar_lea.hbm %s3, %s1047
          %s1049 = sshll.u32 [#allocation8], 4
          %s1050 = int_to_ptr.vmem [resolvable:$true] %s1049
          %1055 = dma.vmem_to_hbm [thread:$0]  %s1050, 2048, %s1048, [#allocation5], 128, 128, 8
        $region52: #{tpu_custom_call.1} parent=31 // pred_fallthru
          _
        // Predicated region
        $region53: #{tpu_custom_call.1} parent=31 // pred_check
          %p1056 = pneg %p142
        $region54: #{tpu_custom_call.1} parent=31 // pred_check_branch
          %1058 = sbr.rel (%p1056) target = $region56
        $region55: #{tpu_custom_call.1} parent=31 // pred_region
          %1059 = dma.done [#allocation5], 2048
        $region56: #{tpu_custom_call.1} parent=31 // pred_fallthru
          _
      $region32: #{tpu_custom_call.1} parent=5 // pred_fallthru
        _
      %p1060 = scmp.le.s32.totalorder 2, %s16
      // Predicated region
      $region57: #{tpu_custom_call.1} parent=5 // pred_check
        %p1061 = pneg %p1060
      $region58: #{tpu_custom_call.1} parent=5 // pred_check_branch
        %1063 = sbr.rel (%p1061) target = $region60
      $region59: #{tpu_custom_call.1} parent=5 // pred_region
        %s1064 = ssub.s32 %s16, 2
      $region60: #{tpu_custom_call.1} parent=5 // pred_fallthru
        _
    $region6: #{tpu_custom_call.1} parent=1 // loop_footer
      %s20 = sadd.s32 1, %s16
    $region7: #{tpu_custom_call.1} parent=1 // loop_footer_branch
      %15 = sbr.rel target = $region3
    $region8: #{tpu_custom_call.1} parent=1 // loop_exit
      _
    %1065 = vsyncpa [#allocation4], 1
    %s1066 = scalar_lea.sflag [#allocation4], 1
    %1067 = vsyncpa %s1066, 1
    %1068 = vsyncpa [#allocation7], 1
    %s1069 = scalar_lea.sflag [#allocation7], 1
    %1070 = vsyncpa %s1069, 1
    %1071 = vsyncpa [#allocation5], 1
    %s1072 = scalar_lea.sflag [#allocation5], 1
    %1073 = vsyncpa %s1072, 1

</llo_original>
